<compile_context>
chip_gen: v6e
topology: v6e:2x2x1
jax: 0.10.0
libtpu: 0.0.40
codegen_flags: <defaults>
</compile_context>

<pallas_src>
import jax
import jax.numpy as jnp
import numpy as np
from jax.experimental import pallas as pl
from jax.experimental.pallas import tpu as pltpu


_EPS = 1e-8
_TM_MAX = 512       # rows per grid step (multiple of 8; MXU/sublane friendly)
_LANE = 128
_SUBLANE = 8
_MIB = 1024 * 1024


def _round_up(x, m):
    return (x + m - 1) // m * m


# ----------------------------- kernels ---------------------------------------


def _encoder_kernel_norm(x_ref, wt_ref, b_ref, o_ref):
    # x_ref: (TM, img_dim)  wt_ref: (img_dim, E) [bf16]  b_ref: (1, E) f32  o_ref: (TM, E)
    x = x_ref[...].astype(wt_ref.dtype)                       # bf16 MXU operands
    feat = jnp.dot(x, wt_ref[...], preferred_element_type=jnp.float32)
    feat = feat + b_ref[...].astype(jnp.float32)
    # l2norm along the last dim:  X / (sqrt(sum(X^2)) + eps), all in f32.
    sq_sum = jnp.sum(feat * feat, axis=-1, keepdims=True)     # (TM, 1)
    # EUP approx reciprocal on the (TM,1) column (~2^-12 rel err); use approx=False
    # (or feat / norm) if exact parity with torch.div is ever required.
    inv = pl.reciprocal(jnp.sqrt(sq_sum) + _EPS, approx=True)
    o_ref[...] = (feat * inv).astype(o_ref.dtype)


def _encoder_kernel_nonorm(x_ref, wt_ref, b_ref, o_ref):
    x = x_ref[...].astype(wt_ref.dtype)
    feat = jnp.dot(x, wt_ref[...], preferred_element_type=jnp.float32)
    o_ref[...] = (feat + b_ref[...].astype(jnp.float32)).astype(o_ref.dtype)


# ------------------------- VMEM / tiling helpers ------------------------------


def _physical_vmem_bytes():
    """Per-core physical VMEM; conservative 64 MiB (v7x) fallback if the query fails."""
    try:
        info = pltpu.get_tpu_info()
        for name in ("vmem_capacity_bytes", "vmem_bytes", "vmem_size_bytes"):
            v = getattr(info, name, None)
            if v:
                return int(v)
    except Exception:
        pass
    return 64 * _MIB


def _vmem_estimate(tm, img_dim, e_pad, x_bytes, w_bytes, out_bytes, w_bufs):
    x_tiles = 2 * tm * img_dim * x_bytes                     # auto double-buffered x tiles
    out_tiles = 2 * tm * e_pad * out_bytes                   # auto double-buffered out tiles
    w_res = w_bufs * (img_dim * e_pad * w_bytes + e_pad * 4)  # resident W^T + bias
    feat_tmp = tm * e_pad * 4                                # f32 feat temporary in the body
    return x_tiles + out_tiles + w_res + feat_tmp


def _build_call(kernel, m_pad, tm, img_dim, e_pad, out_dtype, vmem_limit,
                single_buffer_invariants):
    if single_buffer_invariants:
        # W^T / bias never change across the grid: one buffer each frees a full
        # img_dim*e_pad chunk of VMEM (decisive on v7x's 64 MiB).
        inv_kwargs = dict(pipeline_mode=pl.Buffered(1))
    else:
        inv_kwargs = {}
    return pl.pallas_call(
        kernel,
        out_shape=jax.ShapeDtypeStruct((m_pad, e_pad), out_dtype),
        grid=(m_pad // tm,),
        in_specs=[
            pl.BlockSpec((tm, img_dim), lambda i: (i, 0)),                    # x tile (pipelined)
            pl.BlockSpec((img_dim, e_pad), lambda i: (0, 0), **inv_kwargs),   # W^T (resident)
            pl.BlockSpec((1, e_pad), lambda i: (0, 0), **inv_kwargs),         # bias (resident)
        ],
        out_specs=pl.BlockSpec((tm, e_pad), lambda i: (i, 0)),
        compiler_params=pltpu.CompilerParams(
            dimension_semantics=("parallel",),        # shard row tiles across TCs on v7x
            vmem_limit_bytes=int(vmem_limit),
        ),
    )


# ------------------------------ public API ------------------------------------


def prepare_encoder_params(weight, bias, *, compute_dtype=jnp.bfloat16):
    """One-time parameter prep (do NOT call per forward).

    Pads embed to a lane multiple, transposes to (img_dim, e_pad) and casts W^T to the
    MXU compute dtype (bf16 by default; pass jnp.float32 for strict f32-operand parity
    at ~3x lower MXU throughput).  Zero pad columns contribute 0 to the row L2 norm,
    so results are exact w.r.t. the unpadded layer.
    """
    embed_size, img_dim = weight.shape
    e_pad = _round_up(embed_size, _LANE)
    if e_pad != embed_size:
        weight = jnp.pad(weight, ((0, e_pad - embed_size), (0, 0)))
        bias = jnp.pad(bias, (0, e_pad - embed_size))
    wt = weight.T.astype(compute_dtype)                 # (img_dim, e_pad)
    b2d = bias.reshape(1, e_pad).astype(jnp.float32)
    return {"wt": wt, "b2d": b2d, "img_dim": img_dim,
            "embed_size": embed_size, "e_pad": e_pad}


_BUFFERED1_STATE = "probe"   # "probe" -> try pl.Buffered(1) once, then "on" / "off"


def encoder_image_precomp(images, params, *, no_imgnorm=False, out_dtype=None):
    """images: (..., img_dim) -> (..., embed_size) features (l2-normalized unless no_imgnorm)."""
    global _BUFFERED1_STATE

    wt, b2d = params["wt"], params["b2d"]
    img_dim, embed_size, e_pad = params["img_dim"], params["embed_size"], params["e_pad"]
    *lead, k = images.shape
    assert k == img_dim, "images' last dim must equal the Linear in_features"
    out_dtype = images.dtype if out_dtype is None else out_dtype

    m = int(np.prod(lead)) if lead else 1
    x2d = images.reshape(m, img_dim)

    # Row tiling: multiple of 8; for small M pick >=2 grid steps so both v7x TCs get work.
    if m <= 2 * _TM_MAX:
        tm = max(_SUBLANE, _round_up(-(-m // 2), _SUBLANE))
    else:
        tm = _TM_MAX

    # Generation-aware VMEM sizing (v5e/v6e: 128 MiB physical, v7x: 64 MiB).
    phys = _physical_vmem_bytes()
    budget = int(phys * 0.70)      # headroom for compiler scratch / retiling copies
    x_b = jnp.dtype(images.dtype).itemsize
    w_b = jnp.dtype(wt.dtype).itemsize
    o_b = jnp.dtype(out_dtype).itemsize

    def est(t, w_bufs):
        return _vmem_estimate(t, img_dim, e_pad, x_b, w_b, o_b, w_bufs)

    while tm > 64 and est(tm, 2) > budget:          # conservative: assume W double-buffered
        tm = max(64, _round_up(tm // 2, _SUBLANE))
    # TODO(synk): K-split grid axis with a VMEM f32 accumulator if W^T alone exceeds budget.
    vmem_limit = max(32 * _MIB, min(int(phys * 0.90), 2 * est(tm, 2)))

    m_pad = _round_up(m, tm)
    if m_pad != m:   # zero rows: norm == eps, 0 * (1/eps) == 0, so no NaN/Inf leaks
        x2d = jnp.pad(x2d, ((0, m_pad - m), (0, 0)))

    kernel = _encoder_kernel_nonorm if no_imgnorm else _encoder_kernel_norm
    args = (kernel, m_pad, tm, img_dim, e_pad, out_dtype, vmem_limit)

    if _BUFFERED1_STATE == "on":
        out = _build_call(*args, single_buffer_invariants=True)(x2d, wt, b2d)
    elif _BUFFERED1_STATE == "off":
        out = _build_call(*args, single_buffer_invariants=False)(x2d, wt, b2d)
    else:
        # One-time probe: single-buffered invariants (pl.Buffered(1)) may not be supported
        # by every jax/libtpu build; fall back to default double-buffering if it is not.
        try:
            out = jax.block_until_ready(
                _build_call(*args, single_buffer_invariants=True)(x2d, wt, b2d))
            _BUFFERED1_STATE = "on"
        except Exception:
            _BUFFERED1_STATE = "off"
            out = _build_call(*args, single_buffer_invariants=False)(x2d, wt, b2d)

    out = out[:m, :embed_size]
    return out.reshape(*lead, embed_size)


def init_params(key, img_dim, embed_size):
    """Xavier-uniform (same formula as the PyTorch init_weights), zero bias."""
    r = np.sqrt(6.0) / np.sqrt(img_dim + embed_size)
    weight = jax.random.uniform(
        key, (embed_size, img_dim), dtype=jnp.float32, minval=-r, maxval=r
    )
    bias = jnp.zeros((embed_size,), dtype=jnp.float32)
    return weight, bias


if __name__ == "__main__":
    key = jax.random.PRNGKey(0)
    k_w, k_x = jax.random.split(key)

    batch, n_regions, img_dim, embed_size = 2, 8, 32, 64
    weight, bias = init_params(k_w, img_dim, embed_size)
    # Small non-zero bias so the bias-add path is actually exercised.
    bias = 0.01 * jax.random.normal(
        jax.random.PRNGKey(1), (embed_size,), dtype=jnp.float32
    )
    images = jax.random.normal(k_x, (batch, n_regions, img_dim), dtype=jnp.float32)

    # One-time parameter prep (pad + transpose + bf16 cast), cached across forwards.
    params = prepare_encoder_params(weight, bias)

    features = jax.block_until_ready(encoder_image_precomp(images, params))

    # Pure-JAX f32 reference of the module semantics.
    ref = images @ weight.T + bias
    ref = ref / (jnp.sqrt(jnp.sum(ref * ref, axis=-1, keepdims=True)) + 1e-8)

    # Tolerance covers bf16 MXU operands (~2^-9 rel per operand), the EUP approx
    # reciprocal (~2^-12 rel) and accumulation-order differences.
    np.testing.assert_allclose(np.asarray(features), np.asarray(ref),
                               rtol=2e-2, atol=2e-2)
    assert features.shape == (batch, n_regions, embed_size)
    assert features.dtype == images.dtype

    # Also exercise the no_imgnorm branch once (plain linear layer).
    feats_nn = jax.block_until_ready(
        encoder_image_precomp(images, params, no_imgnorm=True)
    )
    np.testing.assert_allclose(np.asarray(feats_nn),
                               np.asarray(images @ weight.T + bias),
                               rtol=2e-2, atol=2e-2)

    print("KERNEL_OK")
</pallas_src>

<mosaic_0001>
module attributes {stable_mosaic.version = 11 : i64} {
  func.func @_encoder_kernel_norm(%arg0: i32, %arg1: memref<8x32xf32, #tpu.memory_space<vmem>>, %arg2: memref<32x128xbf16, #tpu.memory_space<vmem>>, %arg3: memref<1x128xf32, #tpu.memory_space<vmem>>, %arg4: memref<8x128xf32, #tpu.memory_space<vmem>>) attributes {dimension_semantics = [#tpu.dimension_semantics<parallel>], iteration_bounds = array<i64: 2>, scalar_prefetch = 0 : i64, scratch_operands = 0 : i64, tpu.core_type = #tpu.core_type<tc>, window_params = [{transform_indices = @transform_0, window_bounds = array<i64: 8, 32>}, {pipeline_mode = #tpu.pipeline_mode<synchronous>, transform_indices = @transform_1, window_bounds = array<i64: 32, 128>}, {pipeline_mode = #tpu.pipeline_mode<synchronous>, transform_indices = @transform_2, window_bounds = array<i64: 1, 128>}, {transform_indices = @transform_3, window_bounds = array<i64: 8, 128>}]} {
    %c0 = arith.constant 0 : index
    %c0_0 = arith.constant 0 : index
    %0 = vector.load %arg1[%c0, %c0_0] : memref<8x32xf32, #tpu.memory_space<vmem>>, vector<8x32xf32>
    %1 = arith.truncf %0 : vector<8x32xf32> to vector<8x32xbf16>
    %c0_1 = arith.constant 0 : index
    %c0_2 = arith.constant 0 : index
    %2 = vector.load %arg2[%c0_1, %c0_2] : memref<32x128xbf16, #tpu.memory_space<vmem>>, vector<32x128xbf16>
    %cst = arith.constant dense<0.000000e+00> : vector<8x128xf32>
    %3 = tpu.matmul %1, %2, %cst {dimension_numbers = #tpu.dot_dimension_numbers<[1], [0], [0], [1], [0, 0, 1, 1], [], []>} : vector<8x32xbf16>, vector<32x128xbf16>, vector<8x128xf32> -> vector<8x128xf32>
    %c0_3 = arith.constant 0 : index
    %c0_4 = arith.constant 0 : index
    %4 = vector.load %arg3[%c0_3, %c0_4] : memref<1x128xf32, #tpu.memory_space<vmem>>, vector<1x128xf32>
    %5 = vector.broadcast %4 : vector<1x128xf32> to vector<8x128xf32>
    %6 = arith.addf %3, %5 : vector<8x128xf32>
    %7 = arith.mulf %6, %6 : vector<8x128xf32>
    %cst_5 = arith.constant dense<0.000000e+00> : vector<8xf32>
    %8 = vector.multi_reduction <add>, %7, %cst_5 [1] : vector<8x128xf32> to vector<8xf32>
    %9 = vector.shape_cast %8 : vector<8xf32> to vector<8x1xf32>
    %10 = math.sqrt %9 : vector<8x1xf32>
    %cst_6 = arith.constant 9.99999993E-9 : f32
    %11 = vector.broadcast %cst_6 : f32 to vector<8x1xf32>
    %12 = arith.addf %10, %11 : vector<8x1xf32>
    %13 = tpu.reciprocal %12 {approx = true} : vector<8x1xf32> -> vector<8x1xf32>
    %14 = vector.broadcast %13 : vector<8x1xf32> to vector<8x128xf32>
    %15 = arith.mulf %6, %14 : vector<8x128xf32>
    %c0_7 = arith.constant 0 : index
    %c0_8 = arith.constant 0 : index
    %16 = vector.load %arg4[%c0_7, %c0_8] : memref<8x128xf32, #tpu.memory_space<vmem>>, vector<8x128xf32>
    tpu.vector_store %arg4[%c0_7, %c0_8], %15 {strides = array<i32>} : memref<8x128xf32, #tpu.memory_space<vmem>>, vector<8x128xf32>,
    return
  }
  func.func @transform_0(%arg0: i32) -> (i32, i32) {
    %c0_i32 = arith.constant 0 : i32
    %c0_i32_0 = arith.constant 0 : i32
    return %arg0, %c0_i32 : i32, i32
  }
  func.func @transform_1(%arg0: i32) -> (i32, i32) {
    %c0_i32 = arith.constant 0 : i32
    %c0_i32_0 = arith.constant 0 : i32
    %c0_i32_1 = arith.constant 0 : i32
    return %c0_i32, %c0_i32_0 : i32, i32
  }
  func.func @transform_2(%arg0: i32) -> (i32, i32) {
    %c0_i32 = arith.constant 0 : i32
    %c0_i32_0 = arith.constant 0 : i32
    %c0_i32_1 = arith.constant 0 : i32
    return %c0_i32, %c0_i32_0 : i32, i32
  }
  func.func @transform_3(%arg0: i32) -> (i32, i32) {
    %c0_i32 = arith.constant 0 : i32
    %c0_i32_0 = arith.constant 0 : i32
    return %arg0, %c0_i32 : i32, i32
  }
}

module attributes {stable_mosaic.version = 11 : i64} {
  func.func @_encoder_kernel_norm(%arg0: i32, %arg1: memref<8x32xf32, #tpu.memory_space<vmem>>, %arg2: memref<32x128xbf16, #tpu.memory_space<vmem>>, %arg3: memref<1x128xf32, #tpu.memory_space<vmem>>, %arg4: memref<8x128xf32, #tpu.memory_space<vmem>>) attributes {dimension_semantics = [#tpu.dimension_semantics<parallel>], iteration_bounds = array<i64: 2>, scalar_prefetch = 0 : i64, scratch_operands = 0 : i64, tpu.core_type = #tpu.core_type<tc>, window_params = [{transform_indices = @transform_0, window_bounds = array<i64: 8, 32>}, {pipeline_mode = #tpu.pipeline_mode<synchronous>, transform_indices = @transform_1, window_bounds = array<i64: 32, 128>}, {pipeline_mode = #tpu.pipeline_mode<synchronous>, transform_indices = @transform_2, window_bounds = array<i64: 1, 128>}, {transform_indices = @transform_3, window_bounds = array<i64: 8, 128>}]} {
    %c0 = arith.constant 0 : index
    %c0_0 = arith.constant 0 : index
    %0 = vector.load %arg1[%c0, %c0_0] : memref<8x32xf32, #tpu.memory_space<vmem>>, vector<8x32xf32>
    %1 = arith.truncf %0 : vector<8x32xf32> to vector<8x32xbf16>
    %c0_1 = arith.constant 0 : index
    %c0_2 = arith.constant 0 : index
    %2 = vector.load %arg2[%c0_1, %c0_2] : memref<32x128xbf16, #tpu.memory_space<vmem>>, vector<32x128xbf16>
    %cst = arith.constant dense<0.000000e+00> : vector<8x128xf32>
    %3 = tpu.matmul %1, %2, %cst {dimension_numbers = #tpu.dot_dimension_numbers<[1], [0], [0], [1], [0, 0, 1, 1], [], []>} : vector<8x32xbf16>, vector<32x128xbf16>, vector<8x128xf32> -> vector<8x128xf32>
    %c0_3 = arith.constant 0 : index
    %c0_4 = arith.constant 0 : index
    %4 = vector.load %arg3[%c0_3, %c0_4] : memref<1x128xf32, #tpu.memory_space<vmem>>, vector<1x128xf32>
    %5 = vector.broadcast %4 : vector<1x128xf32> to vector<8x128xf32>
    %6 = arith.addf %3, %5 : vector<8x128xf32>
    %7 = arith.mulf %6, %6 : vector<8x128xf32>
    %cst_5 = arith.constant dense<0.000000e+00> : vector<8xf32>
    %8 = vector.multi_reduction <add>, %7, %cst_5 [1] : vector<8x128xf32> to vector<8xf32>
    %9 = vector.shape_cast %8 : vector<8xf32> to vector<8x1xf32>
    %10 = math.sqrt %9 : vector<8x1xf32>
    %cst_6 = arith.constant 9.99999993E-9 : f32
    %11 = vector.broadcast %cst_6 : f32 to vector<8x1xf32>
    %12 = arith.addf %10, %11 : vector<8x1xf32>
    %13 = tpu.reciprocal %12 {approx = true} : vector<8x1xf32> -> vector<8x1xf32>
    %14 = vector.broadcast %13 : vector<8x1xf32> to vector<8x128xf32>
    %15 = arith.mulf %6, %14 : vector<8x128xf32>
    %c0_7 = arith.constant 0 : index
    %c0_8 = arith.constant 0 : index
    %16 = vector.load %arg4[%c0_7, %c0_8] : memref<8x128xf32, #tpu.memory_space<vmem>>, vector<8x128xf32>
    tpu.vector_store %arg4[%c0_7, %c0_8], %15 {strides = array<i32>} : memref<8x128xf32, #tpu.memory_space<vmem>>, vector<8x128xf32>,
    return
  }
  func.func @transform_0(%arg0: i32) -> (i32, i32) {
    %c0_i32 = arith.constant 0 : i32
    %c0_i32_0 = arith.constant 0 : i32
    return %arg0, %c0_i32 : i32, i32
  }
  func.func @transform_1(%arg0: i32) -> (i32, i32) {
    %c0_i32 = arith.constant 0 : i32
    %c0_i32_0 = arith.constant 0 : i32
    %c0_i32_1 = arith.constant 0 : i32
    return %c0_i32, %c0_i32_0 : i32, i32
  }
  func.func @transform_2(%arg0: i32) -> (i32, i32) {
    %c0_i32 = arith.constant 0 : i32
    %c0_i32_0 = arith.constant 0 : i32
    %c0_i32_1 = arith.constant 0 : i32
    return %c0_i32, %c0_i32_0 : i32, i32
  }
  func.func @transform_3(%arg0: i32) -> (i32, i32) {
    %c0_i32 = arith.constant 0 : i32
    %c0_i32_0 = arith.constant 0 : i32
    return %arg0, %c0_i32 : i32, i32
  }
}

</mosaic_0001>

<llo_original>
// kernel: tpu_custom_call.1
$region0: #{tpu_custom_call.1}
  #allocation0 [shape = 'u32[]', space=smem, size = 0x4, offset = 0x4, fixed_abs, tag = 'smem constant byte address 0x4 - core index']
  #allocation1 [shape = 'u32[144,128]{1,0:T(1,128)}', space=vmem, size = 0x12000, scoped, tag = 'internal scratch']
  %s0 = inlined_call_operand.hbm [shape: f32[16,32], index: 0, kind: input, shape index: {}]
  %s1 = inlined_call_operand.hbm [shape: bf16[32,128], index: 1, kind: input, shape index: {}]
  %s2 = inlined_call_operand.vmem [shape: f32[1,128], index: 2, kind: input, shape index: {}]
  %s3 = inlined_call_operand.hbm [shape: f32[16,128], index: 3, kind: output, shape index: {}]
  %s4 = sld [smem:[#allocation0]]
  $region53: #{tpu_custom_call.1} parent=0
    _
  %s6 = ssub.s32 1, %s4
  %s7 = scalar_select 0, %s6, %s4
  $region1: #{tpu_custom_call.1} parent=0
    #allocation2 [shape = 'u8[8192]{0}', space=vmem, size = 0x2000, scoped, tag = 'input window, operand 0']
    #allocation3 [shape = 's32[2]{0}', space=sflag, size = 0x8, scoped, tag = 'scoped memory for tpu_custom_call.1']
    #allocation4 [shape = 's32[2]{0}', space=sflag, size = 0x8, scoped, tag = 'scoped memory for tpu_custom_call.1']
    #allocation5 [shape = 'u8[8192]{0}', space=vmem, size = 0x2000, scoped, tag = 'input window, operand 1, single buffered']
    #allocation6 [shape = 's32[1]{0}', space=sflag, size = 0x4, scoped, tag = 'scoped memory for tpu_custom_call.1']
    #allocation7 [shape = 'u8[8192]{0}', space=vmem, size = 0x2000, scoped, tag = 'output window, operand 0']
    %8 = vsyncpa [#allocation3], 0
    %s9 = scalar_lea.sflag [#allocation3], 1
    %10 = vsyncpa %s9, 0
    %11 = vsyncpa [#allocation6], 0
    %12 = vsyncpa [#allocation4], 0
    %s13 = scalar_lea.sflag [#allocation4], 1
    %14 = vsyncpa %s13, 0
    loop: start=0, step=1, limit=4
    $region2: #{tpu_custom_call.1} parent=1 // loop_pre_header
      _
    $region3: #{tpu_custom_call.1} parent=1 // loop_header
      %s16 = sphi 0, %s20
      %p17 = scmp.ge.s32.totalorder %s16, 4
      %s26 = sphi 0, %s28
      %s29 = sphi 0, %s26
      %s30 = sphi 0, %s29
      %s46 = sphi 0, %s30
      %s50 = sphi 0, %s50
      %s52 = sphi 0, %s50
      %s53 = sphi 0, %s52
      %s67 = sphi 0, %s53
      %s71 = sphi 0, %s71
      %s73 = sphi 0, %s71
      %s74 = sphi 0, %s73
      %s88 = sphi 0, %s74
      %s94 = sphi 0, %s96
      %s97 = sphi 0, %s94
      %s98 = sphi 0, %s97
      %s114 = sphi 0, %s98
    $region4: #{tpu_custom_call.1} parent=1 // loop_header_branch
      %19 = sbr.rel (%p17) target = $region8
    $region5: #{tpu_custom_call.1} parent=1 // loop_body
      %s21 = ssub.s32 %s16, 1
      %s22 = ssub.s32 %s16, 2
      %s23 = sadd.s32 %s16, 1
      %s24 = ssub.s32 %s16, %s23
      %p25 = scmp.eq.s32.totalorder %s24, 0
      %s27 = sadd.s32 %s26, 1
      %s28 = scalar_select %p25, %s26, %s27
      %p31 = pneg %p25
      %p32 = scmp.eq.s32.totalorder %s16, 1
      %p33 = por %p31, %p32
      %p34 = scmp.ne.s32.totalorder %s26, %s29
      %p35 = scmp.eq.s32.totalorder %s16, 0
      %p36 = por %p34, %p35
      %p37 = scmp.ne.s32.totalorder %s26, %s29
      %p38 = scmp.eq.s32.totalorder %s21, 1
      %p39 = por %p37, %p38
      %p40 = scmp.ne.s32.totalorder %s29, %s30
      %p41 = scmp.eq.s32.totalorder %s21, 0
      %p42 = por %p40, %p41
      %p43 = scmp.ne.s32.totalorder %s29, %s30
      %p44 = scmp.eq.s32.totalorder %s22, 1
      %p45 = por %p43, %p44
      %p47 = scmp.ne.s32.totalorder %s30, %s46
      %p48 = scmp.eq.s32.totalorder %s22, 0
      %p49 = por %p47, %p48
      %s51 = sadd.s32 %s50, 1
      %p54 = scmp.eq.s32.totalorder %s16, 1
      %p55 = scmp.ne.s32.totalorder %s50, %s52
      %p56 = scmp.eq.s32.totalorder %s16, 0
      %p57 = por %p55, %p56
      %p58 = scmp.ne.s32.totalorder %s50, %s52
      %p59 = scmp.eq.s32.totalorder %s21, 1
      %p60 = por %p58, %p59
      %p61 = scmp.ne.s32.totalorder %s52, %s53
      %p62 = scmp.eq.s32.totalorder %s21, 0
      %p63 = por %p61, %p62
      %p64 = scmp.ne.s32.totalorder %s52, %s53
      %p65 = scmp.eq.s32.totalorder %s22, 1
      %p66 = por %p64, %p65
      %p68 = scmp.ne.s32.totalorder %s53, %s67
      %p69 = scmp.eq.s32.totalorder %s22, 0
      %p70 = por %p68, %p69
      %s72 = sadd.s32 %s71, 1
      %p75 = scmp.eq.s32.totalorder %s16, 1
      %p76 = scmp.ne.s32.totalorder %s71, %s73
      %p77 = scmp.eq.s32.totalorder %s16, 0
      %p78 = por %p76, %p77
      %p79 = scmp.ne.s32.totalorder %s71, %s73
      %p80 = scmp.eq.s32.totalorder %s21, 1
      %p81 = por %p79, %p80
      %p82 = scmp.ne.s32.totalorder %s73, %s74
      %p83 = scmp.eq.s32.totalorder %s21, 0
      %p84 = por %p82, %p83
      %p85 = scmp.ne.s32.totalorder %s73, %s74
      %p86 = scmp.eq.s32.totalorder %s22, 1
      %p87 = por %p85, %p86
      %p89 = scmp.ne.s32.totalorder %s74, %s88
      %p90 = scmp.eq.s32.totalorder %s22, 0
      %p91 = por %p89, %p90
      %s92 = ssub.s32 %s16, %s23
      %p93 = scmp.eq.s32.totalorder %s92, 0
      %s95 = sadd.s32 %s94, 1
      %s96 = scalar_select %p93, %s94, %s95
      %p99 = pneg %p93
      %p100 = scmp.eq.s32.totalorder %s16, 1
      %p101 = por %p99, %p100
      %p102 = scmp.ne.s32.totalorder %s94, %s97
      %p103 = scmp.eq.s32.totalorder %s16, 0
      %p104 = por %p102, %p103
      %p105 = scmp.ne.s32.totalorder %s94, %s97
      %p106 = scmp.eq.s32.totalorder %s21, 1
      %p107 = por %p105, %p106
      %p108 = scmp.ne.s32.totalorder %s97, %s98
      %p109 = scmp.eq.s32.totalorder %s21, 0
      %p110 = por %p108, %p109
      %p111 = scmp.ne.s32.totalorder %s97, %s98
      %p112 = scmp.eq.s32.totalorder %s22, 1
      %p113 = por %p111, %p112
      %p115 = scmp.ne.s32.totalorder %s98, %s114
      %p116 = scmp.eq.s32.totalorder %s22, 0
      %p117 = por %p115, %p116
      %p118 = scmp.le.s32.totalorder 1, %s16
      %p119 = scmp.lt.s32.totalorder %s16, 3
      %p120 = pnand %p118, %p119
      %p121 = pneg %p120
      // Predicated region
      $region9: #{tpu_custom_call.1} parent=5 // pred_check
        _
      $region10: #{tpu_custom_call.1} parent=5 // pred_check_branch
        %123 = sbr.rel (%p120) target = $region12
      $region11: #{tpu_custom_call.1} parent=5 // pred_region
        %s124 = ssub.s32 %s16, 1
        // Predicated region
        $region13: #{tpu_custom_call.1} parent=11 // pred_check
          %p125 = pneg %p63
        $region14: #{tpu_custom_call.1} parent=11 // pred_check_branch
          %127 = sbr.rel (%p125) target = $region16
        $region15: #{tpu_custom_call.1} parent=11 // pred_region
          %s129 = ssub.s32 256, 256
          %130 = vsyncadd [#allocation6], %s129
          %s131 = sshll.u32 [#allocation5], 4
          %s132 = int_to_ptr.vmem [resolvable:$true] %s131
          %137 = dma.hbm_to_vmem [thread:$0]  %s1, 256, %s132, [#allocation6], 64, 64, 4
        $region16: #{tpu_custom_call.1} parent=11 // pred_fallthru
          _
        // Predicated region
        $region17: #{tpu_custom_call.1} parent=11 // pred_check
          %p138 = pneg %p84
        $region18: #{tpu_custom_call.1} parent=11 // pred_check_branch
          %140 = sbr.rel (%p138) target = $region20
        $region19: #{tpu_custom_call.1} parent=11 // pred_region
          _
        $region20: #{tpu_custom_call.1} parent=11 // pred_fallthru
          _
      $region12: #{tpu_custom_call.1} parent=5 // pred_fallthru
        _
      %p141 = scmp.lt.s32.totalorder %s16, 2
      // Predicated region
      $region21: #{tpu_custom_call.1} parent=5 // pred_check
        %p142 = pneg %p141
      $region22: #{tpu_custom_call.1} parent=5 // pred_check_branch
        %144 = sbr.rel (%p142) target = $region24
      $region23: #{tpu_custom_call.1} parent=5 // pred_region
        // Predicated region
        $region25: #{tpu_custom_call.1} parent=23 // pred_check
          %p145 = pneg %p36
        $region26: #{tpu_custom_call.1} parent=23 // pred_check_branch
          %147 = sbr.rel (%p145) target = $region28
        $region27: #{tpu_custom_call.1} parent=23 // pred_region
          %s148 = sand.u32 %s26, 1
          %s149 = scalar_lea.sflag [#allocation3], %s148
          %s150 = sand.u32 %s26, 1
          %s151 = smul.addr %s150, 8
          %s152 = scalar_lea.vmem [#allocation2], %s151
          %s154 = ssub.s32 128, 128
          %155 = vsyncadd %s149, %s154
          %s156 = smul.addr %s16, 128
          %s157 = scalar_lea.hbm %s0, %s156
          %s159 = sshll.u32 %s152, 4
          %s160 = int_to_ptr.vmem [resolvable:$true] %s159
          %162 = dma.hbm_to_vmem [thread:$0]  %s157, 128, %s160, %s149
        $region28: #{tpu_custom_call.1} parent=23 // pred_fallthru
          _
      $region24: #{tpu_custom_call.1} parent=5 // pred_fallthru
        _
      %p163 = scmp.le.s32.totalorder 1, %s16
      %p164 = scmp.lt.s32.totalorder %s16, 3
      %p165 = pnand %p163, %p164
      %p166 = pneg %p165
      // Predicated region
      $region29: #{tpu_custom_call.1} parent=5 // pred_check
        _
      $region30: #{tpu_custom_call.1} parent=5 // pred_check_branch
        %168 = sbr.rel (%p165) target = $region32
      $region31: #{tpu_custom_call.1} parent=5 // pred_region
        %s169 = ssub.s32 %s16, 1
        %s170 = sand.u32 %s29, 1
        %s171 = scalar_lea.sflag [#allocation3], %s170
        %s172 = sand.u32 %s29, 1
        %s173 = smul.addr %s172, 8
        %s174 = scalar_lea.vmem [#allocation2], %s173
        // Predicated region
        $region33: #{tpu_custom_call.1} parent=31 // pred_check
          %p175 = pneg %p42
        $region34: #{tpu_custom_call.1} parent=31 // pred_check_branch
          %177 = sbr.rel (%p175) target = $region36
        $region35: #{tpu_custom_call.1} parent=31 // pred_region
          %178 = dma.done %s171, 128
        $region36: #{tpu_custom_call.1} parent=31 // pred_fallthru
          _
        // Predicated region
        $region37: #{tpu_custom_call.1} parent=31 // pred_check
          %p179 = pneg %p63
        $region38: #{tpu_custom_call.1} parent=31 // pred_check_branch
          %181 = sbr.rel (%p179) target = $region40
        $region39: #{tpu_custom_call.1} parent=31 // pred_region
          %182 = dma.done [#allocation6], 256
        $region40: #{tpu_custom_call.1} parent=31 // pred_fallthru
          _
        %s183 = sand.u32 %s29, 1
        %s184 = scalar_lea.sflag [#allocation3], %s183
        %s185 = sand.u32 %s29, 1
        %s186 = smul.addr %s185, 8
        %s187 = scalar_lea.vmem [#allocation2], %s186
        %p188 = pneg %p42
        %p189 = pneg %p39
        %p190 = pneg %p63
        %p191 = pneg %p60
        %p192 = pneg %p84
        %p193 = pneg %p81
        %p194 = pneg %p110
        %p195 = pneg %p107
        %s196 = sand.u32 %s97, 1
        %s197 = scalar_lea.sflag [#allocation4], %s196
        %s198 = sand.u32 %s97, 1
        %s199 = smul.addr %s198, 8
        %s200 = scalar_lea.vmem [#allocation7], %s199
        %v202 = vld [vmem:[%s174] sm:$0xff]
        %v203 = vpack.c.bf16 %v202, %v202
        %v204 = vld [vmem:[#allocation5] sm:$0xf]
        %v205 = vld [vmem:[#allocation5 + $0x4] sm:$0xf]
        %v206 = vld [vmem:[#allocation5 + $0x8] sm:$0xf]
        %v207 = vld [vmem:[#allocation5 + $0xc] sm:$0xf]
        %v208 = vld [vmem:[%s2] sm:$0x1]
        %v210 = vlaneseq
        %v211 = vshrl.u32 %v210, 7
        %v212 = vsub.s32 0, %v211
        %v213 = vrot.slane %v208, %v212
        %v219 = vunpack.c.l.b16 %v204
        %v220 = vunpack.c.l.b16 %v205
        %v221 = vunpack.c.l.b16 %v206
        %v222 = vunpack.c.l.b16 %v207
        %v223 = vpack.c.b16 %v220, %v219
        %v224 = vpack.c.b16 %v222, %v221
        %vm227 = vcmask 261120
        %v229 = vsel %vm227, %v203, 0
        %231 = vmatprep.subr.bf16.mxu0 0
        %232 = vmatpush1.bf16.msra.mxu0 0
        %233 = vmatprep.subr.bf16.mxu0 0
        %234 = vmatpush1.bf16.msra.mxu0 0
        %235 = vmatprep.subr.bf16.mxu0 0
        %236 = vmatpush1.bf16.msra.mxu0 0
        %237 = vmatprep.subr.bf16.mxu0 0
        %238 = vmatpush1.bf16.msra.mxu0 0
        %239 = vmatprep.subr.bf16.mxu0 0
        %240 = vmatpush1.bf16.msra.mxu0 0
        %241 = vmatprep.subr.bf16.mxu0 0
        %242 = vmatpush1.bf16.msra.mxu0 0
        %243 = vmatprep.subr.bf16.mxu0 0
        %244 = vmatpush1.bf16.msra.mxu0 %v224
        %245 = vmatprep.subr.bf16.mxu0 0
        %246 = vmatpush1.bf16.msra.mxu0 %v223
        %247 = vmatprep.subr.bf16.mxu0 0
        %248 = vmatpush2.bf16.msra.mxu0 0
        %249 = vmatprep.subr.bf16.mxu0 0
        %250 = vmatpush2.bf16.msra.mxu0 0
        %251 = vmatprep.subr.bf16.mxu0 0
        %252 = vmatpush2.bf16.msra.mxu0 0
        %253 = vmatprep.subr.bf16.mxu0 0
        %254 = vmatpush2.bf16.msra.mxu0 0
        %255 = vmatprep.subr.bf16.mxu0 0
        %256 = vmatpush2.bf16.msra.mxu0 0
        %257 = vmatprep.subr.bf16.mxu0 0
        %258 = vmatpush2.bf16.msra.mxu0 0
        %259 = vmatprep.subr.bf16.mxu0 0
        %260 = vmatpush2.bf16.msra.mxu0 0
        %261 = vmatprep.subr.bf16.mxu0 0
        %262 = vmatpush2.bf16.msra.mxu0 0
        %263 = vmatprep.mubr.bf16.mxu0 0
        %264 = vmatmul.mubr.bf16.gmra.mxu0 %v229
        %v265 = vpop.f32.mrf.mxu0
        %v266 = vadd.f32 %v213, %v265
        %v267 = vpop.f32.mrf.mxu0
        %v268 = vpop.f32.mrf.mxu0
        %v269 = vpop.f32.mrf.mxu0
        %270 = vdwg.mxu0
        %v271 = vmul.f32 %v266, %v266
        %272 = vadd.xlane.f32.xlu0 %v271
        %v273 = vpop.xlane.xlu0 %272
        %v274 = vrsqrt.pop %v273
        %v275 = vmul.f32 %v273, %v274
        %vm276 = vcmp.eq.f32.partialorder %v273, inf
        %v277 = vsel %vm276, %v273, %v275
        %vm278 = vcmp.eq.f32.partialorder %v273, 0.0
        %v279 = vand.u32 %v273, 2147483648
        %v280 = vsel %vm278, %v279, %v277
        %v281 = vadd.f32 %v280, 1e-08
        %v282 = vrcp.pop %v281
        %v283 = vmul.f32 %v266, %v282
        %284 = vst [vmem:[%s200] sm:$0xff] %v283
        %s285 = sand.u32 %s97, 1
        %s286 = scalar_lea.sflag [#allocation4], %s285
        %s287 = sand.u32 %s97, 1
        %s288 = smul.addr %s287, 8
        %s289 = scalar_lea.vmem [#allocation7], %s288
        // Predicated region
        $region41: #{tpu_custom_call.1} parent=31 // pred_check
          %p290 = pneg %p107
        $region42: #{tpu_custom_call.1} parent=31 // pred_check_branch
          %292 = sbr.rel (%p290) target = $region44
        $region43: #{tpu_custom_call.1} parent=31 // pred_region
          %s294 = ssub.s32 128, 128
          %295 = vsyncadd %s286, %s294
          %s296 = smul.addr %s21, 128
          %s297 = scalar_lea.hbm %s3, %s296
          %s299 = sshll.u32 %s289, 4
          %s300 = int_to_ptr.vmem [resolvable:$true] %s299
          %302 = dma.vmem_to_hbm [thread:$0]  %s300, 128, %s297, %s286
        $region44: #{tpu_custom_call.1} parent=31 // pred_fallthru
          _
      $region32: #{tpu_custom_call.1} parent=5 // pred_fallthru
        _
      %p303 = scmp.le.s32.totalorder 2, %s16
      // Predicated region
      $region45: #{tpu_custom_call.1} parent=5 // pred_check
        %p304 = pneg %p303
      $region46: #{tpu_custom_call.1} parent=5 // pred_check_branch
        %306 = sbr.rel (%p304) target = $region48
      $region47: #{tpu_custom_call.1} parent=5 // pred_region
        %s307 = ssub.s32 %s16, 2
        // Predicated region
        $region49: #{tpu_custom_call.1} parent=47 // pred_check
          %p308 = pneg %p113
        $region50: #{tpu_custom_call.1} parent=47 // pred_check_branch
          %310 = sbr.rel (%p308) target = $region52
        $region51: #{tpu_custom_call.1} parent=47 // pred_region
          %s311 = sand.u32 %s98, 1
          %s312 = scalar_lea.sflag [#allocation4], %s311
          %s313 = sand.u32 %s98, 1
          %s314 = smul.addr %s313, 8
          %s315 = scalar_lea.vmem [#allocation7], %s314
          %316 = dma.done %s312, 128
        $region52: #{tpu_custom_call.1} parent=47 // pred_fallthru
          _
      $region48: #{tpu_custom_call.1} parent=5 // pred_fallthru
        _
    $region6: #{tpu_custom_call.1} parent=1 // loop_footer
      %s20 = sadd.s32 1, %s16
    $region7: #{tpu_custom_call.1} parent=1 // loop_footer_branch
      %15 = sbr.rel target = $region3
    $region8: #{tpu_custom_call.1} parent=1 // loop_exit
      _
    %317 = vsyncpa [#allocation3], 1
    %s318 = scalar_lea.sflag [#allocation3], 1
    %319 = vsyncpa %s318, 1
    %320 = vsyncpa [#allocation6], 1
    %321 = vsyncpa [#allocation4], 1
    %s322 = scalar_lea.sflag [#allocation4], 1
    %323 = vsyncpa %s322, 1

// kernel: tpu_custom_call.1
$region0: #{tpu_custom_call.1}
  #allocation0 [shape = 'u32[]', space=smem, size = 0x4, offset = 0x4, fixed_abs, tag = 'smem constant byte address 0x4 - core index']
  #allocation1 [shape = 'u32[144,128]{1,0:T(1,128)}', space=vmem, size = 0x12000, scoped, tag = 'internal scratch']
  %s0 = inlined_call_operand.hbm [shape: f32[16,32], index: 0, kind: input, shape index: {}]
  %s1 = inlined_call_operand.hbm [shape: bf16[32,128], index: 1, kind: input, shape index: {}]
  %s2 = inlined_call_operand.vmem [shape: f32[1,128], index: 2, kind: input, shape index: {}]
  %s3 = inlined_call_operand.hbm [shape: f32[16,128], index: 3, kind: output, shape index: {}]
  %s4 = sld [smem:[#allocation0]]
  $region53: #{tpu_custom_call.1} parent=0
    _
  %s6 = ssub.s32 1, %s4
  %s7 = scalar_select 0, %s6, %s4
  $region1: #{tpu_custom_call.1} parent=0
    #allocation2 [shape = 'u8[8192]{0}', space=vmem, size = 0x2000, scoped, tag = 'input window, operand 0']
    #allocation3 [shape = 's32[2]{0}', space=sflag, size = 0x8, scoped, tag = 'scoped memory for tpu_custom_call.1']
    #allocation4 [shape = 's32[2]{0}', space=sflag, size = 0x8, scoped, tag = 'scoped memory for tpu_custom_call.1']
    #allocation5 [shape = 'u8[8192]{0}', space=vmem, size = 0x2000, scoped, tag = 'input window, operand 1, single buffered']
    #allocation6 [shape = 's32[1]{0}', space=sflag, size = 0x4, scoped, tag = 'scoped memory for tpu_custom_call.1']
    #allocation7 [shape = 'u8[8192]{0}', space=vmem, size = 0x2000, scoped, tag = 'output window, operand 0']
    %8 = vsyncpa [#allocation3], 0
    %s9 = scalar_lea.sflag [#allocation3], 1
    %10 = vsyncpa %s9, 0
    %11 = vsyncpa [#allocation6], 0
    %12 = vsyncpa [#allocation4], 0
    %s13 = scalar_lea.sflag [#allocation4], 1
    %14 = vsyncpa %s13, 0
    loop: start=0, step=1, limit=4
    $region2: #{tpu_custom_call.1} parent=1 // loop_pre_header
      _
    $region3: #{tpu_custom_call.1} parent=1 // loop_header
      %s16 = sphi 0, %s20
      %p17 = scmp.ge.s32.totalorder %s16, 4
      %s26 = sphi 0, %s28
      %s29 = sphi 0, %s26
      %s30 = sphi 0, %s29
      %s46 = sphi 0, %s30
      %s50 = sphi 0, %s50
      %s52 = sphi 0, %s50
      %s53 = sphi 0, %s52
      %s67 = sphi 0, %s53
      %s71 = sphi 0, %s71
      %s73 = sphi 0, %s71
      %s74 = sphi 0, %s73
      %s88 = sphi 0, %s74
      %s94 = sphi 0, %s96
      %s97 = sphi 0, %s94
      %s98 = sphi 0, %s97
      %s114 = sphi 0, %s98
    $region4: #{tpu_custom_call.1} parent=1 // loop_header_branch
      %19 = sbr.rel (%p17) target = $region8
    $region5: #{tpu_custom_call.1} parent=1 // loop_body
      %s21 = ssub.s32 %s16, 1
      %s22 = ssub.s32 %s16, 2
      %s23 = sadd.s32 %s16, 1
      %s24 = ssub.s32 %s16, %s23
      %p25 = scmp.eq.s32.totalorder %s24, 0
      %s27 = sadd.s32 %s26, 1
      %s28 = scalar_select %p25, %s26, %s27
      %p31 = pneg %p25
      %p32 = scmp.eq.s32.totalorder %s16, 1
      %p33 = por %p31, %p32
      %p34 = scmp.ne.s32.totalorder %s26, %s29
      %p35 = scmp.eq.s32.totalorder %s16, 0
      %p36 = por %p34, %p35
      %p37 = scmp.ne.s32.totalorder %s26, %s29
      %p38 = scmp.eq.s32.totalorder %s21, 1
      %p39 = por %p37, %p38
      %p40 = scmp.ne.s32.totalorder %s29, %s30
      %p41 = scmp.eq.s32.totalorder %s21, 0
      %p42 = por %p40, %p41
      %p43 = scmp.ne.s32.totalorder %s29, %s30
      %p44 = scmp.eq.s32.totalorder %s22, 1
      %p45 = por %p43, %p44
      %p47 = scmp.ne.s32.totalorder %s30, %s46
      %p48 = scmp.eq.s32.totalorder %s22, 0
      %p49 = por %p47, %p48
      %s51 = sadd.s32 %s50, 1
      %p54 = scmp.eq.s32.totalorder %s16, 1
      %p55 = scmp.ne.s32.totalorder %s50, %s52
      %p56 = scmp.eq.s32.totalorder %s16, 0
      %p57 = por %p55, %p56
      %p58 = scmp.ne.s32.totalorder %s50, %s52
      %p59 = scmp.eq.s32.totalorder %s21, 1
      %p60 = por %p58, %p59
      %p61 = scmp.ne.s32.totalorder %s52, %s53
      %p62 = scmp.eq.s32.totalorder %s21, 0
      %p63 = por %p61, %p62
      %p64 = scmp.ne.s32.totalorder %s52, %s53
      %p65 = scmp.eq.s32.totalorder %s22, 1
      %p66 = por %p64, %p65
      %p68 = scmp.ne.s32.totalorder %s53, %s67
      %p69 = scmp.eq.s32.totalorder %s22, 0
      %p70 = por %p68, %p69
      %s72 = sadd.s32 %s71, 1
      %p75 = scmp.eq.s32.totalorder %s16, 1
      %p76 = scmp.ne.s32.totalorder %s71, %s73
      %p77 = scmp.eq.s32.totalorder %s16, 0
      %p78 = por %p76, %p77
      %p79 = scmp.ne.s32.totalorder %s71, %s73
      %p80 = scmp.eq.s32.totalorder %s21, 1
      %p81 = por %p79, %p80
      %p82 = scmp.ne.s32.totalorder %s73, %s74
      %p83 = scmp.eq.s32.totalorder %s21, 0
      %p84 = por %p82, %p83
      %p85 = scmp.ne.s32.totalorder %s73, %s74
      %p86 = scmp.eq.s32.totalorder %s22, 1
      %p87 = por %p85, %p86
      %p89 = scmp.ne.s32.totalorder %s74, %s88
      %p90 = scmp.eq.s32.totalorder %s22, 0
      %p91 = por %p89, %p90
      %s92 = ssub.s32 %s16, %s23
      %p93 = scmp.eq.s32.totalorder %s92, 0
      %s95 = sadd.s32 %s94, 1
      %s96 = scalar_select %p93, %s94, %s95
      %p99 = pneg %p93
      %p100 = scmp.eq.s32.totalorder %s16, 1
      %p101 = por %p99, %p100
      %p102 = scmp.ne.s32.totalorder %s94, %s97
      %p103 = scmp.eq.s32.totalorder %s16, 0
      %p104 = por %p102, %p103
      %p105 = scmp.ne.s32.totalorder %s94, %s97
      %p106 = scmp.eq.s32.totalorder %s21, 1
      %p107 = por %p105, %p106
      %p108 = scmp.ne.s32.totalorder %s97, %s98
      %p109 = scmp.eq.s32.totalorder %s21, 0
      %p110 = por %p108, %p109
      %p111 = scmp.ne.s32.totalorder %s97, %s98
      %p112 = scmp.eq.s32.totalorder %s22, 1
      %p113 = por %p111, %p112
      %p115 = scmp.ne.s32.totalorder %s98, %s114
      %p116 = scmp.eq.s32.totalorder %s22, 0
      %p117 = por %p115, %p116
      %p118 = scmp.le.s32.totalorder 1, %s16
      %p119 = scmp.lt.s32.totalorder %s16, 3
      %p120 = pnand %p118, %p119
      %p121 = pneg %p120
      // Predicated region
      $region9: #{tpu_custom_call.1} parent=5 // pred_check
        _
      $region10: #{tpu_custom_call.1} parent=5 // pred_check_branch
        %123 = sbr.rel (%p120) target = $region12
      $region11: #{tpu_custom_call.1} parent=5 // pred_region
        %s124 = ssub.s32 %s16, 1
        // Predicated region
        $region13: #{tpu_custom_call.1} parent=11 // pred_check
          %p125 = pneg %p63
        $region14: #{tpu_custom_call.1} parent=11 // pred_check_branch
          %127 = sbr.rel (%p125) target = $region16
        $region15: #{tpu_custom_call.1} parent=11 // pred_region
          %s129 = ssub.s32 256, 256
          %130 = vsyncadd [#allocation6], %s129
          %s131 = sshll.u32 [#allocation5], 4
          %s132 = int_to_ptr.vmem [resolvable:$true] %s131
          %137 = dma.hbm_to_vmem [thread:$0]  %s1, 256, %s132, [#allocation6], 64, 64, 4
        $region16: #{tpu_custom_call.1} parent=11 // pred_fallthru
          _
        // Predicated region
        $region17: #{tpu_custom_call.1} parent=11 // pred_check
          %p138 = pneg %p84
        $region18: #{tpu_custom_call.1} parent=11 // pred_check_branch
          %140 = sbr.rel (%p138) target = $region20
        $region19: #{tpu_custom_call.1} parent=11 // pred_region
          _
        $region20: #{tpu_custom_call.1} parent=11 // pred_fallthru
          _
      $region12: #{tpu_custom_call.1} parent=5 // pred_fallthru
        _
      %p141 = scmp.lt.s32.totalorder %s16, 2
      // Predicated region
      $region21: #{tpu_custom_call.1} parent=5 // pred_check
        %p142 = pneg %p141
      $region22: #{tpu_custom_call.1} parent=5 // pred_check_branch
        %144 = sbr.rel (%p142) target = $region24
      $region23: #{tpu_custom_call.1} parent=5 // pred_region
        // Predicated region
        $region25: #{tpu_custom_call.1} parent=23 // pred_check
          %p145 = pneg %p36
        $region26: #{tpu_custom_call.1} parent=23 // pred_check_branch
          %147 = sbr.rel (%p145) target = $region28
        $region27: #{tpu_custom_call.1} parent=23 // pred_region
          %s148 = sand.u32 %s26, 1
          %s149 = scalar_lea.sflag [#allocation3], %s148
          %s150 = sand.u32 %s26, 1
          %s151 = smul.addr %s150, 8
          %s152 = scalar_lea.vmem [#allocation2], %s151
          %s154 = ssub.s32 128, 128
          %155 = vsyncadd %s149, %s154
          %s156 = smul.addr %s16, 128
          %s157 = scalar_lea.hbm %s0, %s156
          %s159 = sshll.u32 %s152, 4
          %s160 = int_to_ptr.vmem [resolvable:$true] %s159
          %162 = dma.hbm_to_vmem [thread:$0]  %s157, 128, %s160, %s149
        $region28: #{tpu_custom_call.1} parent=23 // pred_fallthru
          _
      $region24: #{tpu_custom_call.1} parent=5 // pred_fallthru
        _
      %p163 = scmp.le.s32.totalorder 1, %s16
      %p164 = scmp.lt.s32.totalorder %s16, 3
      %p165 = pnand %p163, %p164
      %p166 = pneg %p165
      // Predicated region
      $region29: #{tpu_custom_call.1} parent=5 // pred_check
        _
      $region30: #{tpu_custom_call.1} parent=5 // pred_check_branch
        %168 = sbr.rel (%p165) target = $region32
      $region31: #{tpu_custom_call.1} parent=5 // pred_region
        %s169 = ssub.s32 %s16, 1
        %s170 = sand.u32 %s29, 1
        %s171 = scalar_lea.sflag [#allocation3], %s170
        %s172 = sand.u32 %s29, 1
        %s173 = smul.addr %s172, 8
        %s174 = scalar_lea.vmem [#allocation2], %s173
        // Predicated region
        $region33: #{tpu_custom_call.1} parent=31 // pred_check
          %p175 = pneg %p42
        $region34: #{tpu_custom_call.1} parent=31 // pred_check_branch
          %177 = sbr.rel (%p175) target = $region36
        $region35: #{tpu_custom_call.1} parent=31 // pred_region
          %178 = dma.done %s171, 128
        $region36: #{tpu_custom_call.1} parent=31 // pred_fallthru
          _
        // Predicated region
        $region37: #{tpu_custom_call.1} parent=31 // pred_check
          %p179 = pneg %p63
        $region38: #{tpu_custom_call.1} parent=31 // pred_check_branch
          %181 = sbr.rel (%p179) target = $region40
        $region39: #{tpu_custom_call.1} parent=31 // pred_region
          %182 = dma.done [#allocation6], 256
        $region40: #{tpu_custom_call.1} parent=31 // pred_fallthru
          _
        %s183 = sand.u32 %s29, 1
        %s184 = scalar_lea.sflag [#allocation3], %s183
        %s185 = sand.u32 %s29, 1
        %s186 = smul.addr %s185, 8
        %s187 = scalar_lea.vmem [#allocation2], %s186
        %p188 = pneg %p42
        %p189 = pneg %p39
        %p190 = pneg %p63
        %p191 = pneg %p60
        %p192 = pneg %p84
        %p193 = pneg %p81
        %p194 = pneg %p110
        %p195 = pneg %p107
        %s196 = sand.u32 %s97, 1
        %s197 = scalar_lea.sflag [#allocation4], %s196
        %s198 = sand.u32 %s97, 1
        %s199 = smul.addr %s198, 8
        %s200 = scalar_lea.vmem [#allocation7], %s199
        %v202 = vld [vmem:[%s174] sm:$0xff]
        %v203 = vpack.c.bf16 %v202, %v202
        %v204 = vld [vmem:[#allocation5] sm:$0xf]
        %v205 = vld [vmem:[#allocation5 + $0x4] sm:$0xf]
        %v206 = vld [vmem:[#allocation5 + $0x8] sm:$0xf]
        %v207 = vld [vmem:[#allocation5 + $0xc] sm:$0xf]
        %v208 = vld [vmem:[%s2] sm:$0x1]
        %v210 = vlaneseq
        %v211 = vshrl.u32 %v210, 7
        %v212 = vsub.s32 0, %v211
        %v213 = vrot.slane %v208, %v212
        %v219 = vunpack.c.l.b16 %v204
        %v220 = vunpack.c.l.b16 %v205
        %v221 = vunpack.c.l.b16 %v206
        %v222 = vunpack.c.l.b16 %v207
        %v223 = vpack.c.b16 %v220, %v219
        %v224 = vpack.c.b16 %v222, %v221
        %vm227 = vcmask 261120
        %v229 = vsel %vm227, %v203, 0
        %231 = vmatprep.subr.bf16.mxu0 0
        %232 = vmatpush1.bf16.msra.mxu0 0
        %233 = vmatprep.subr.bf16.mxu0 0
        %234 = vmatpush1.bf16.msra.mxu0 0
        %235 = vmatprep.subr.bf16.mxu0 0
        %236 = vmatpush1.bf16.msra.mxu0 0
        %237 = vmatprep.subr.bf16.mxu0 0
        %238 = vmatpush1.bf16.msra.mxu0 0
        %239 = vmatprep.subr.bf16.mxu0 0
        %240 = vmatpush1.bf16.msra.mxu0 0
        %241 = vmatprep.subr.bf16.mxu0 0
        %242 = vmatpush1.bf16.msra.mxu0 0
        %243 = vmatprep.subr.bf16.mxu0 0
        %244 = vmatpush1.bf16.msra.mxu0 %v224
        %245 = vmatprep.subr.bf16.mxu0 0
        %246 = vmatpush1.bf16.msra.mxu0 %v223
        %247 = vmatprep.subr.bf16.mxu0 0
        %248 = vmatpush2.bf16.msra.mxu0 0
        %249 = vmatprep.subr.bf16.mxu0 0
        %250 = vmatpush2.bf16.msra.mxu0 0
        %251 = vmatprep.subr.bf16.mxu0 0
        %252 = vmatpush2.bf16.msra.mxu0 0
        %253 = vmatprep.subr.bf16.mxu0 0
        %254 = vmatpush2.bf16.msra.mxu0 0
        %255 = vmatprep.subr.bf16.mxu0 0
        %256 = vmatpush2.bf16.msra.mxu0 0
        %257 = vmatprep.subr.bf16.mxu0 0
        %258 = vmatpush2.bf16.msra.mxu0 0
        %259 = vmatprep.subr.bf16.mxu0 0
        %260 = vmatpush2.bf16.msra.mxu0 0
        %261 = vmatprep.subr.bf16.mxu0 0
        %262 = vmatpush2.bf16.msra.mxu0 0
        %263 = vmatprep.mubr.bf16.mxu0 0
        %264 = vmatmul.mubr.bf16.gmra.mxu0 %v229
        %v265 = vpop.f32.mrf.mxu0
        %v266 = vadd.f32 %v213, %v265
        %v267 = vpop.f32.mrf.mxu0
        %v268 = vpop.f32.mrf.mxu0
        %v269 = vpop.f32.mrf.mxu0
        %270 = vdwg.mxu0
        %v271 = vmul.f32 %v266, %v266
        %272 = vadd.xlane.f32.xlu0 %v271
        %v273 = vpop.xlane.xlu0 %272
        %v274 = vrsqrt.pop %v273
        %v275 = vmul.f32 %v273, %v274
        %vm276 = vcmp.eq.f32.partialorder %v273, inf
        %v277 = vsel %vm276, %v273, %v275
        %vm278 = vcmp.eq.f32.partialorder %v273, 0.0
        %v279 = vand.u32 %v273, 2147483648
        %v280 = vsel %vm278, %v279, %v277
        %v281 = vadd.f32 %v280, 1e-08
        %v282 = vrcp.pop %v281
        %v283 = vmul.f32 %v266, %v282
        %284 = vst [vmem:[%s200] sm:$0xff] %v283
        %s285 = sand.u32 %s97, 1
        %s286 = scalar_lea.sflag [#allocation4], %s285
        %s287 = sand.u32 %s97, 1
        %s288 = smul.addr %s287, 8
        %s289 = scalar_lea.vmem [#allocation7], %s288
        // Predicated region
        $region41: #{tpu_custom_call.1} parent=31 // pred_check
          %p290 = pneg %p107
        $region42: #{tpu_custom_call.1} parent=31 // pred_check_branch
          %292 = sbr.rel (%p290) target = $region44
        $region43: #{tpu_custom_call.1} parent=31 // pred_region
          %s294 = ssub.s32 128, 128
          %295 = vsyncadd %s286, %s294
          %s296 = smul.addr %s21, 128
          %s297 = scalar_lea.hbm %s3, %s296
          %s299 = sshll.u32 %s289, 4
          %s300 = int_to_ptr.vmem [resolvable:$true] %s299
          %302 = dma.vmem_to_hbm [thread:$0]  %s300, 128, %s297, %s286
        $region44: #{tpu_custom_call.1} parent=31 // pred_fallthru
          _
      $region32: #{tpu_custom_call.1} parent=5 // pred_fallthru
        _
      %p303 = scmp.le.s32.totalorder 2, %s16
      // Predicated region
      $region45: #{tpu_custom_call.1} parent=5 // pred_check
        %p304 = pneg %p303
      $region46: #{tpu_custom_call.1} parent=5 // pred_check_branch
        %306 = sbr.rel (%p304) target = $region48
      $region47: #{tpu_custom_call.1} parent=5 // pred_region
        %s307 = ssub.s32 %s16, 2
        // Predicated region
        $region49: #{tpu_custom_call.1} parent=47 // pred_check
          %p308 = pneg %p113
        $region50: #{tpu_custom_call.1} parent=47 // pred_check_branch
          %310 = sbr.rel (%p308) target = $region52
        $region51: #{tpu_custom_call.1} parent=47 // pred_region
          %s311 = sand.u32 %s98, 1
          %s312 = scalar_lea.sflag [#allocation4], %s311
          %s313 = sand.u32 %s98, 1
          %s314 = smul.addr %s313, 8
          %s315 = scalar_lea.vmem [#allocation7], %s314
          %316 = dma.done %s312, 128
        $region52: #{tpu_custom_call.1} parent=47 // pred_fallthru
          _
      $region48: #{tpu_custom_call.1} parent=5 // pred_fallthru
        _
    $region6: #{tpu_custom_call.1} parent=1 // loop_footer
      %s20 = sadd.s32 1, %s16
    $region7: #{tpu_custom_call.1} parent=1 // loop_footer_branch
      %15 = sbr.rel target = $region3
    $region8: #{tpu_custom_call.1} parent=1 // loop_exit
      _
    %317 = vsyncpa [#allocation3], 1
    %s318 = scalar_lea.sflag [#allocation3], 1
    %319 = vsyncpa %s318, 1
    %320 = vsyncpa [#allocation6], 1
    %321 = vsyncpa [#allocation4], 1
    %s322 = scalar_lea.sflag [#allocation4], 1
    %323 = vsyncpa %s322, 1

</llo_original>
